<compile_context>
chip_gen: v6e
topology: v6e:2x2x1
jax: 0.10.0
libtpu: 0.0.40
codegen_flags: <defaults>
</compile_context>

<pallas_src>
import functools

import jax
import jax.numpy as jnp
from jax.experimental import pallas as pl
from jax.experimental.pallas import tpu as pltpu

_LANE = 128
_SUBLANE = 8
_NEG_INF = -1e30  # padded-class bias: exp() underflows to exactly 0 in softmax


def _round_up(x, m):
    return ((x + m - 1) // m) * m


def _cdiv(a, b):
    return -(-a // b)


def _choose_tiling(b8):
    """Pick (tb, grid_n, b_pad): balanced batch tiles, minimal padding waste."""
    TB_CAP = 2048                      # v6e/v7x sweet spot; fine on v5e too
    min_steps = 2 if b8 >= 512 else 1  # let "parallel" use both v7x TCs
    base = max(min_steps, _cdiv(b8, TB_CAP))
    best = None
    for g in (base, base + 1, base + 2):
        align = _LANE if g > 1 else _SUBLANE   # out lane dim needs 128-align when tiled
        tb = _round_up(_cdiv(b8, g), align)
        pad = g * tb - b8
        key = (pad, g)                 # minimize waste first, then step count
        if best is None or key < best[0]:
            best = (key, tb, g, g * tb)
    _, tb, grid_n, b_pad = best
    return tb, grid_n, b_pad


def ffnn_kernel(x_ref, w1_ref, b1_ref, w3_ref, b3_ref, w4_ref, b4_ref, o_ref):
    # Layer 1: Linear(input_dim -> h) + ReLU.  bf16 MXU operands, f32 accumulation.
    x = x_ref[...].astype(jnp.bfloat16)
    h1 = jnp.dot(x, w1_ref[...], preferred_element_type=jnp.float32)
    h1 = jnp.maximum(h1 + b1_ref[...], 0.0).astype(jnp.bfloat16)

    # Dropout(p=0.3): identity in eval mode.

    # Layer 2: Linear(h -> h//2) + ReLU.
    h2 = jnp.dot(h1, w3_ref[...], preferred_element_type=jnp.float32)
    h2 = jnp.maximum(h2 + b3_ref[...], 0.0).astype(jnp.bfloat16)

    # Layer 3: Linear(h//2 -> 5); class axis padded to 128 lanes (VMEM only).
    logits = jnp.dot(h2, w4_ref[...], preferred_element_type=jnp.float32) + b4_ref[...]

    # Numerically stable LogSoftmax over classes.  Padded class lanes carry a
    # -1e30 f32 bias, so exp(shifted) underflows to 0 for them.
    m = jnp.max(logits, axis=-1, keepdims=True)
    shifted = logits - m
    lse = jnp.log(jnp.sum(jnp.exp(shifted), axis=-1, keepdims=True))
    logp = shifted - lse                                   # (tb, out_p) f32

    # Transposed, sublane-narrow store: only out_sub(=8) sublanes x tb lanes hit
    # HBM (lane-dense along batch) instead of a 128-lane f32 slab per row.
    o_ref[...] = jnp.transpose(logp)[: o_ref.shape[0], :]


def prepare_params(w1_t, b1, w3_t, b3, w4_t, b4):
    """Pad/cast weights ONCE (outside the per-call path). Weights are [in, out]."""
    d_in, h = w1_t.shape
    h2 = w3_t.shape[1]
    n_cls = w4_t.shape[1]
    h_p, h2_p, out_p = (_round_up(v, _LANE) for v in (h, h2, n_cls))
    bf16, f32 = jnp.bfloat16, jnp.float32

    w1p = jnp.zeros((d_in, h_p), bf16).at[:, :h].set(w1_t.astype(bf16))
    w3p = jnp.zeros((h_p, h2_p), bf16).at[:h, :h2].set(w3_t.astype(bf16))
    w4p = jnp.zeros((h2_p, out_p), bf16).at[:h2, :n_cls].set(w4_t.astype(bf16))
    b1p = jnp.zeros((1, h_p), f32).at[:, :h].set(b1.reshape(1, -1).astype(f32))
    b3p = jnp.zeros((1, h2_p), f32).at[:, :h2].set(b3.reshape(1, -1).astype(f32))
    b4p = jnp.full((1, out_p), _NEG_INF, f32).at[:, :n_cls].set(
        b4.reshape(1, -1).astype(f32))
    return (w1p, b1p, w3p, b3p, w4p, b4p), n_cls


@functools.partial(jax.jit, static_argnames=("n_cls",))
def ffnn_forward(x, w1p, b1p, w3p, b3p, w4p, b4p, *, n_cls=5):
    """x: [B, input_dim] (or [input_dim]); params from prepare_params()."""
    if x.ndim == 1:                      # mirror torch `unsqueeze(0)`
        x = x[None, :]
    B, d_in = x.shape
    assert d_in == w1p.shape[0], "input_dim mismatch with prepared params"
    h_p = w1p.shape[1]
    h2_p = w3p.shape[1]
    out_p = w4p.shape[1]
    out_sub = _round_up(max(n_cls, 1), _SUBLANE)   # stored class sublanes (8)

    b8 = _round_up(B, _SUBLANE)
    tb, grid_n, b_pad = _choose_tiling(b8)

    # Only batch padding (no feature-dim padding of x in HBM).
    xp = x if b_pad == B else jnp.zeros((b_pad, d_in), x.dtype).at[:B].set(x)
    x_bytes = jnp.dtype(x.dtype).itemsize

    # VMEM budget: resident weights + double-buffered x/out tiles + f32/bf16
    # compute scratch, 2x headroom, clamped to [16 MiB, 48 MiB] (v7x-safe).
    resident = (w1p.size + w3p.size + w4p.size) * 2 + (b1p.size + b3p.size + b4p.size) * 4
    streamed = 2 * (tb * d_in * x_bytes + out_sub * tb * 4)
    scratch = tb * (h_p + h2_p) * 2 + 4 * tb * out_p * 4
    vmem_limit = int(min(48 << 20, max(16 << 20, 2 * (resident + streamed + scratch))))

    flops = 2 * b_pad * (d_in * h_p + h_p * h2_p + h2_p * out_p)
    transcendentals = b_pad * (out_p + 1)
    bytes_accessed = xp.size * x_bytes + resident + out_sub * b_pad * 4

    out_t = pl.pallas_call(
        ffnn_kernel,
        out_shape=jax.ShapeDtypeStruct((out_sub, b_pad), jnp.float32),
        grid_spec=pltpu.PrefetchScalarGridSpec(
            num_scalar_prefetch=0,
            grid=(grid_n,),
            in_specs=[
                pl.BlockSpec((tb, d_in), lambda i: (i, 0)),     # x: pipelined per tile
                pl.BlockSpec((d_in, h_p), lambda i: (0, 0)),    # weights/biases resident
                pl.BlockSpec((1, h_p), lambda i: (0, 0)),
                pl.BlockSpec((h_p, h2_p), lambda i: (0, 0)),
                pl.BlockSpec((1, h2_p), lambda i: (0, 0)),
                pl.BlockSpec((h2_p, out_p), lambda i: (0, 0)),
                pl.BlockSpec((1, out_p), lambda i: (0, 0)),
            ],
            out_specs=pl.BlockSpec((out_sub, tb), lambda i: (0, i)),
        ),
        compiler_params=pltpu.CompilerParams(
            dimension_semantics=("parallel",),
            vmem_limit_bytes=vmem_limit,
        ),
        cost_estimate=pl.CostEstimate(
            flops=flops, transcendentals=transcendentals,
            bytes_accessed=bytes_accessed),
    )(xp, w1p, b1p, w3p, b3p, w4p, b4p)

    return out_t[:n_cls, :B].T           # [B, n_cls] log-probabilities


def init_params(key, input_dim, h):
    """Deterministic, PyTorch-Linear-style uniform init (synthetic weights)."""
    ks = jax.random.split(key, 6)

    def linear(kw, kb, fan_in, fan_out):
        bound = 1.0 / jnp.sqrt(fan_in)
        w_t = jax.random.uniform(kw, (fan_in, fan_out), jnp.float32, -bound, bound)
        b = jax.random.uniform(kb, (1, fan_out), jnp.float32, -bound, bound)
        return w_t, b

    w1_t, b1 = linear(ks[0], ks[1], input_dim, h)
    w3_t, b3 = linear(ks[2], ks[3], h, h // 2)
    w4_t, b4 = linear(ks[4], ks[5], h // 2, 5)
    return w1_t, b1, w3_t, b3, w4_t, b4


if __name__ == "__main__":
    input_dim, h, batch = 32, 32, 8

    key = jax.random.PRNGKey(0)
    k_x, k_p = jax.random.split(key)
    x = jax.random.normal(k_x, (batch, input_dim), dtype=jnp.float32)
    raw_params = init_params(k_p, input_dim, h)

    padded_params, n_cls = prepare_params(*raw_params)
    padded_params = jax.tree_util.tree_map(jax.block_until_ready, padded_params)

    out = jax.block_until_ready(ffnn_forward(x, *padded_params, n_cls=n_cls))

    # Pure-JAX f32 reference (kernel uses bf16 MXU operands -> relaxed tolerance).
    w1_t, b1, w3_t, b3, w4_t, b4 = raw_params
    h1 = jnp.maximum(x @ w1_t + b1, 0.0)
    h2 = jnp.maximum(h1 @ w3_t + b3, 0.0)
    logits = h2 @ w4_t + b4
    ref = jax.nn.log_softmax(logits, axis=1)

    assert out.shape == (batch, 5), out.shape
    assert jnp.allclose(out, ref, atol=5e-2, rtol=5e-2), (
        f"max abs err {jnp.max(jnp.abs(out - ref))}")

    # 1-D input path (torch `unsqueeze(0)` behavior).
    out1 = jax.block_until_ready(ffnn_forward(x[0], *padded_params, n_cls=n_cls))
    assert out1.shape == (1, 5), out1.shape
    assert jnp.allclose(out1, ref[:1], atol=5e-2, rtol=5e-2)

    print("KERNEL_OK")
</pallas_src>

<mosaic_0001>
module attributes {stable_mosaic.version = 11 : i64} {
  func.func @ffnn_kernel(%arg0: i32, %arg1: memref<8x32xf32, #tpu.memory_space<vmem>>, %arg2: memref<32x128xbf16, #tpu.memory_space<vmem>>, %arg3: memref<1x128xf32, #tpu.memory_space<vmem>>, %arg4: memref<128x128xbf16, #tpu.memory_space<vmem>>, %arg5: memref<1x128xf32, #tpu.memory_space<vmem>>, %arg6: memref<128x128xbf16, #tpu.memory_space<vmem>>, %arg7: memref<1x128xf32, #tpu.memory_space<vmem>>, %arg8: memref<8x8xf32, #tpu.memory_space<vmem>>) attributes {dimension_semantics = [#tpu.dimension_semantics<parallel>], iteration_bounds = array<i64: 1>, scalar_prefetch = 0 : i64, scratch_operands = 0 : i64, tpu.core_type = #tpu.core_type<tc>, window_params = [{transform_indices = @transform_0, window_bounds = array<i64: 8, 32>}, {pipeline_mode = #tpu.pipeline_mode<synchronous>, transform_indices = @transform_1, window_bounds = array<i64: 32, 128>}, {pipeline_mode = #tpu.pipeline_mode<synchronous>, transform_indices = @transform_2, window_bounds = array<i64: 1, 128>}, {pipeline_mode = #tpu.pipeline_mode<synchronous>, transform_indices = @transform_3, window_bounds = array<i64: 128, 128>}, {pipeline_mode = #tpu.pipeline_mode<synchronous>, transform_indices = @transform_4, window_bounds = array<i64: 1, 128>}, {pipeline_mode = #tpu.pipeline_mode<synchronous>, transform_indices = @transform_5, window_bounds = array<i64: 128, 128>}, {pipeline_mode = #tpu.pipeline_mode<synchronous>, transform_indices = @transform_6, window_bounds = array<i64: 1, 128>}, {transform_indices = @transform_7, window_bounds = array<i64: 8, 8>}]} {
    %c0 = arith.constant 0 : index
    %c0_0 = arith.constant 0 : index
    %0 = vector.load %arg1[%c0, %c0_0] : memref<8x32xf32, #tpu.memory_space<vmem>>, vector<8x32xf32>
    %1 = arith.truncf %0 : vector<8x32xf32> to vector<8x32xbf16>
    %c0_1 = arith.constant 0 : index
    %c0_2 = arith.constant 0 : index
    %2 = vector.load %arg2[%c0_1, %c0_2] : memref<32x128xbf16, #tpu.memory_space<vmem>>, vector<32x128xbf16>
    %cst = arith.constant dense<0.000000e+00> : vector<8x128xf32>
    %3 = tpu.matmul %1, %2, %cst {dimension_numbers = #tpu.dot_dimension_numbers<[1], [0], [0], [1], [0, 0, 1, 1], [], []>} : vector<8x32xbf16>, vector<32x128xbf16>, vector<8x128xf32> -> vector<8x128xf32>
    %c0_3 = arith.constant 0 : index
    %c0_4 = arith.constant 0 : index
    %4 = vector.load %arg3[%c0_3, %c0_4] : memref<1x128xf32, #tpu.memory_space<vmem>>, vector<1x128xf32>
    %5 = vector.broadcast %4 : vector<1x128xf32> to vector<8x128xf32>
    %6 = arith.addf %3, %5 : vector<8x128xf32>
    %cst_5 = arith.constant 0.000000e+00 : f32
    %7 = vector.broadcast %cst_5 : f32 to vector<8x128xf32>
    %8 = arith.maximumf %6, %7 : vector<8x128xf32>
    %9 = arith.truncf %8 : vector<8x128xf32> to vector<8x128xbf16>
    %c0_6 = arith.constant 0 : index
    %c0_7 = arith.constant 0 : index
    %10 = vector.load %arg4[%c0_6, %c0_7] : memref<128x128xbf16, #tpu.memory_space<vmem>>, vector<128x128xbf16>
    %cst_8 = arith.constant dense<0.000000e+00> : vector<8x128xf32>
    %11 = tpu.matmul %9, %10, %cst_8 {dimension_numbers = #tpu.dot_dimension_numbers<[1], [0], [0], [1], [0, 0, 1, 1], [], []>} : vector<8x128xbf16>, vector<128x128xbf16>, vector<8x128xf32> -> vector<8x128xf32>
    %c0_9 = arith.constant 0 : index
    %c0_10 = arith.constant 0 : index
    %12 = vector.load %arg5[%c0_9, %c0_10] : memref<1x128xf32, #tpu.memory_space<vmem>>, vector<1x128xf32>
    %13 = vector.broadcast %12 : vector<1x128xf32> to vector<8x128xf32>
    %14 = arith.addf %11, %13 : vector<8x128xf32>
    %cst_11 = arith.constant 0.000000e+00 : f32
    %15 = vector.broadcast %cst_11 : f32 to vector<8x128xf32>
    %16 = arith.maximumf %14, %15 : vector<8x128xf32>
    %17 = arith.truncf %16 : vector<8x128xf32> to vector<8x128xbf16>
    %c0_12 = arith.constant 0 : index
    %c0_13 = arith.constant 0 : index
    %18 = vector.load %arg6[%c0_12, %c0_13] : memref<128x128xbf16, #tpu.memory_space<vmem>>, vector<128x128xbf16>
    %cst_14 = arith.constant dense<0.000000e+00> : vector<8x128xf32>
    %19 = tpu.matmul %17, %18, %cst_14 {dimension_numbers = #tpu.dot_dimension_numbers<[1], [0], [0], [1], [0, 0, 1, 1], [], []>} : vector<8x128xbf16>, vector<128x128xbf16>, vector<8x128xf32> -> vector<8x128xf32>
    %c0_15 = arith.constant 0 : index
    %c0_16 = arith.constant 0 : index
    %20 = vector.load %arg7[%c0_15, %c0_16] : memref<1x128xf32, #tpu.memory_space<vmem>>, vector<1x128xf32>
    %21 = vector.broadcast %20 : vector<1x128xf32> to vector<8x128xf32>
    %22 = arith.addf %19, %21 : vector<8x128xf32>
    %cst_17 = arith.constant dense<0xFF800000> : vector<8xf32>
    %23 = vector.multi_reduction <maximumf>, %22, %cst_17 [1] : vector<8x128xf32> to vector<8xf32>
    %24 = vector.shape_cast %23 : vector<8xf32> to vector<8x1xf32>
    %25 = vector.broadcast %24 : vector<8x1xf32> to vector<8x128xf32>
    %26 = arith.subf %22, %25 : vector<8x128xf32>
    %27 = math.exp %26 : vector<8x128xf32>
    %cst_18 = arith.constant dense<0.000000e+00> : vector<8xf32>
    %28 = vector.multi_reduction <add>, %27, %cst_18 [1] : vector<8x128xf32> to vector<8xf32>
    %29 = vector.shape_cast %28 : vector<8xf32> to vector<8x1xf32>
    %30 = math.log %29 : vector<8x1xf32>
    %31 = vector.broadcast %30 : vector<8x1xf32> to vector<8x128xf32>
    %32 = arith.subf %26, %31 : vector<8x128xf32>
    %33 = tpu.transpose %32, [1, 0] : vector<8x128xf32> -> vector<128x8xf32>
    %34 = vector.extract_strided_slice %33 {offsets = [0, 0], sizes = [8, 8], strides = [1, 1]} : vector<128x8xf32> to vector<8x8xf32>
    %c0_19 = arith.constant 0 : index
    %c0_20 = arith.constant 0 : index
    %35 = vector.load %arg8[%c0_19, %c0_20] : memref<8x8xf32, #tpu.memory_space<vmem>>, vector<8x8xf32>
    tpu.vector_store %arg8[%c0_19, %c0_20], %34 {strides = array<i32>} : memref<8x8xf32, #tpu.memory_space<vmem>>, vector<8x8xf32>,
    return
  }
  func.func @transform_0(%arg0: i32) -> (i32, i32) {
    %c0_i32 = arith.constant 0 : i32
    %c0_i32_0 = arith.constant 0 : i32
    return %arg0, %c0_i32 : i32, i32
  }
  func.func @transform_1(%arg0: i32) -> (i32, i32) {
    %c0_i32 = arith.constant 0 : i32
    %c0_i32_0 = arith.constant 0 : i32
    %c0_i32_1 = arith.constant 0 : i32
    return %c0_i32, %c0_i32_0 : i32, i32
  }
  func.func @transform_2(%arg0: i32) -> (i32, i32) {
    %c0_i32 = arith.constant 0 : i32
    %c0_i32_0 = arith.constant 0 : i32
    %c0_i32_1 = arith.constant 0 : i32
    return %c0_i32, %c0_i32_0 : i32, i32
  }
  func.func @transform_3(%arg0: i32) -> (i32, i32) {
    %c0_i32 = arith.constant 0 : i32
    %c0_i32_0 = arith.constant 0 : i32
    %c0_i32_1 = arith.constant 0 : i32
    return %c0_i32, %c0_i32_0 : i32, i32
  }
  func.func @transform_4(%arg0: i32) -> (i32, i32) {
    %c0_i32 = arith.constant 0 : i32
    %c0_i32_0 = arith.constant 0 : i32
    %c0_i32_1 = arith.constant 0 : i32
    return %c0_i32, %c0_i32_0 : i32, i32
  }
  func.func @transform_5(%arg0: i32) -> (i32, i32) {
    %c0_i32 = arith.constant 0 : i32
    %c0_i32_0 = arith.constant 0 : i32
    %c0_i32_1 = arith.constant 0 : i32
    return %c0_i32, %c0_i32_0 : i32, i32
  }
  func.func @transform_6(%arg0: i32) -> (i32, i32) {
    %c0_i32 = arith.constant 0 : i32
    %c0_i32_0 = arith.constant 0 : i32
    %c0_i32_1 = arith.constant 0 : i32
    return %c0_i32, %c0_i32_0 : i32, i32
  }
  func.func @transform_7(%arg0: i32) -> (i32, i32) {
    %c0_i32 = arith.constant 0 : i32
    %c0_i32_0 = arith.constant 0 : i32
    return %c0_i32, %arg0 : i32, i32
  }
}

</mosaic_0001>

<llo_original>
// kernel: ffnn_forward.1
$region0: #{ffnn_forward.1}
  #allocation0 [shape = 'u32[]', space=smem, size = 0x4, offset = 0x4, fixed_abs, tag = 'smem constant byte address 0x4 - core index']
  #allocation1 [shape = 'u32[144,128]{1,0:T(1,128)}', space=vmem, size = 0x12000, scoped, tag = 'internal scratch']
  %s0 = inlined_call_operand.hbm [shape: f32[8,32], index: 0, kind: input, shape index: {}]
  %s1 = inlined_call_operand.hbm [shape: bf16[32,128], index: 1, kind: input, shape index: {}]
  %s2 = inlined_call_operand.vmem [shape: f32[1,128], index: 2, kind: input, shape index: {}]
  %s3 = inlined_call_operand.hbm [shape: bf16[128,128], index: 3, kind: input, shape index: {}]
  %s4 = inlined_call_operand.vmem [shape: f32[1,128], index: 4, kind: input, shape index: {}]
  %s5 = inlined_call_operand.hbm [shape: bf16[128,128], index: 5, kind: input, shape index: {}]
  %s6 = inlined_call_operand.vmem [shape: f32[1,128], index: 6, kind: input, shape index: {}]
  %s7 = inlined_call_operand.vmem [shape: f32[8,8], index: 7, kind: output, shape index: {}]
  %s8 = sld [smem:[#allocation0]]
  $region54: #{ffnn_forward.1} parent=0
    _
  %s10 = ssub.s32 1, %s8
  %s11 = scalar_select 0, %s10, %s8
  $region1: #{ffnn_forward.1} parent=0
    #allocation2 [shape = 'u8[4096]{0}', space=vmem, size = 0x1000, scoped, tag = 'input window, operand 0, single buffered']
    #allocation3 [shape = 's32[1]{0}', space=sflag, size = 0x4, scoped, tag = 'scoped memory for ffnn_forward.1']
    #allocation4 [shape = 'u8[8192]{0}', space=vmem, size = 0x2000, scoped, tag = 'input window, operand 1, single buffered']
    #allocation5 [shape = 's32[1]{0}', space=sflag, size = 0x4, scoped, tag = 'scoped memory for ffnn_forward.1']
    #allocation6 [shape = 'u8[32768]{0}', space=vmem, size = 0x8000, scoped, tag = 'input window, operand 3, single buffered']
    #allocation7 [shape = 'u8[32768]{0}', space=vmem, size = 0x8000, scoped, tag = 'input window, operand 5, single buffered']
    #allocation8 [shape = 's32[1]{0}', space=sflag, size = 0x4, scoped, tag = 'scoped memory for ffnn_forward.1']
    %12 = vsyncpa [#allocation3], 0
    %13 = vsyncpa [#allocation5], 0
    %14 = vsyncpa [#allocation8], 0
    // Predicated region
    $region2: #{ffnn_forward.1} parent=1 // pred_check
      _
    $region3: #{ffnn_forward.1} parent=1 // pred_check_branch
      %16 = sbr.rel (0) target = $region5
    $region4: #{ffnn_forward.1} parent=1 // pred_region
      %s18 = ssub.s32 128, 128
      %19 = vsyncadd [#allocation3], %s18
      %s21 = sshll.u32 [#allocation2], 4
      %s22 = int_to_ptr.vmem [resolvable:$true] %s21
      %24 = dma.hbm_to_vmem [thread:$0]  %s0, 128, %s22, [#allocation3]
    $region5: #{ffnn_forward.1} parent=1 // pred_fallthru
      _
    // Predicated region
    $region6: #{ffnn_forward.1} parent=1 // pred_check
      _
    $region7: #{ffnn_forward.1} parent=1 // pred_check_branch
      %26 = sbr.rel (0) target = $region9
    $region8: #{ffnn_forward.1} parent=1 // pred_region
      %s28 = ssub.s32 256, 256
      %29 = vsyncadd [#allocation5], %s28
      %s30 = sshll.u32 [#allocation4], 4
      %s31 = int_to_ptr.vmem [resolvable:$true] %s30
      %36 = dma.hbm_to_vmem [thread:$0]  %s1, 256, %s31, [#allocation5], 64, 64, 4
    $region9: #{ffnn_forward.1} parent=1 // pred_fallthru
      _
    // Predicated region
    $region10: #{ffnn_forward.1} parent=1 // pred_check
      _
    $region11: #{ffnn_forward.1} parent=1 // pred_check_branch
      %38 = sbr.rel (0) target = $region13
    $region12: #{ffnn_forward.1} parent=1 // pred_region
      _
    $region13: #{ffnn_forward.1} parent=1 // pred_fallthru
      _
    // Predicated region
    $region14: #{ffnn_forward.1} parent=1 // pred_check
      _
    $region15: #{ffnn_forward.1} parent=1 // pred_check_branch
      %40 = sbr.rel (0) target = $region17
    $region16: #{ffnn_forward.1} parent=1 // pred_region
      %s42 = ssub.s32 1024, 1024
      %43 = vsyncadd [#allocation5], %s42
      %s44 = sshll.u32 [#allocation6], 4
      %s45 = int_to_ptr.vmem [resolvable:$true] %s44
      %50 = dma.hbm_to_vmem [thread:$0]  %s3, 1024, %s45, [#allocation5], 64, 64, 4
    $region17: #{ffnn_forward.1} parent=1 // pred_fallthru
      _
    // Predicated region
    $region18: #{ffnn_forward.1} parent=1 // pred_check
      _
    $region19: #{ffnn_forward.1} parent=1 // pred_check_branch
      %52 = sbr.rel (0) target = $region21
    $region20: #{ffnn_forward.1} parent=1 // pred_region
      _
    $region21: #{ffnn_forward.1} parent=1 // pred_fallthru
      _
    // Predicated region
    $region22: #{ffnn_forward.1} parent=1 // pred_check
      _
    $region23: #{ffnn_forward.1} parent=1 // pred_check_branch
      %54 = sbr.rel (0) target = $region25
    $region24: #{ffnn_forward.1} parent=1 // pred_region
      %s56 = ssub.s32 1024, 1024
      %57 = vsyncadd [#allocation8], %s56
      %s58 = sshll.u32 [#allocation7], 4
      %s59 = int_to_ptr.vmem [resolvable:$true] %s58
      %64 = dma.hbm_to_vmem [thread:$0]  %s5, 1024, %s59, [#allocation8], 64, 64, 4
    $region25: #{ffnn_forward.1} parent=1 // pred_fallthru
      _
    // Predicated region
    $region26: #{ffnn_forward.1} parent=1 // pred_check
      _
    $region27: #{ffnn_forward.1} parent=1 // pred_check_branch
      %66 = sbr.rel (0) target = $region29
    $region28: #{ffnn_forward.1} parent=1 // pred_region
      _
    $region29: #{ffnn_forward.1} parent=1 // pred_fallthru
      _
    // Predicated region
    $region30: #{ffnn_forward.1} parent=1 // pred_check
      _
    $region31: #{ffnn_forward.1} parent=1 // pred_check_branch
      %68 = sbr.rel (0) target = $region33
    $region32: #{ffnn_forward.1} parent=1 // pred_region
      %69 = dma.done [#allocation3], 128
    $region33: #{ffnn_forward.1} parent=1 // pred_fallthru
      _
    // Predicated region
    $region34: #{ffnn_forward.1} parent=1 // pred_check
      _
    $region35: #{ffnn_forward.1} parent=1 // pred_check_branch
      %71 = sbr.rel (0) target = $region37
    $region36: #{ffnn_forward.1} parent=1 // pred_region
      %72 = dma.done [#allocation5], 256
    $region37: #{ffnn_forward.1} parent=1 // pred_fallthru
      _
    // Predicated region
    $region38: #{ffnn_forward.1} parent=1 // pred_check
      _
    $region39: #{ffnn_forward.1} parent=1 // pred_check_branch
      %74 = sbr.rel (0) target = $region41
    $region40: #{ffnn_forward.1} parent=1 // pred_region
      %75 = dma.done [#allocation5], 1024
    $region41: #{ffnn_forward.1} parent=1 // pred_fallthru
      _
    // Predicated region
    $region42: #{ffnn_forward.1} parent=1 // pred_check
      _
    $region43: #{ffnn_forward.1} parent=1 // pred_check_branch
      %77 = sbr.rel (0) target = $region45
    $region44: #{ffnn_forward.1} parent=1 // pred_region
      %78 = dma.done [#allocation8], 1024
    $region45: #{ffnn_forward.1} parent=1 // pred_fallthru
      _
    %v80 = vld [vmem:[#allocation2] sm:$0xff]
    %v81 = vpack.c.bf16 %v80, %v80
    %v82 = vld [vmem:[#allocation4] sm:$0xf]
    %v83 = vld [vmem:[#allocation4 + $0x4] sm:$0xf]
    %v84 = vld [vmem:[#allocation4 + $0x8] sm:$0xf]
    %v85 = vld [vmem:[#allocation4 + $0xc] sm:$0xf]
    %v86 = vld [vmem:[%s2] sm:$0x1]
    %v88 = vlaneseq
    %v89 = vshrl.u32 %v88, 7
    %v90 = vsub.s32 0, %v89
    %v91 = vrot.slane %v86, %v90
    %v97 = vunpack.c.l.b16 %v82
    %v98 = vunpack.c.l.b16 %v83
    %v99 = vunpack.c.l.b16 %v84
    %v100 = vunpack.c.l.b16 %v85
    %v101 = vpack.c.b16 %v98, %v97
    %v102 = vpack.c.b16 %v100, %v99
    %vm105 = vcmask 261120
    %v107 = vsel %vm105, %v81, 0
    %109 = vmatprep.subr.bf16.mxu0 0
    %110 = vmatpush1.bf16.msra.mxu0 0
    %111 = vmatprep.subr.bf16.mxu0 0
    %112 = vmatpush1.bf16.msra.mxu0 0
    %113 = vmatprep.subr.bf16.mxu0 0
    %114 = vmatpush1.bf16.msra.mxu0 0
    %115 = vmatprep.subr.bf16.mxu0 0
    %116 = vmatpush1.bf16.msra.mxu0 0
    %117 = vmatprep.subr.bf16.mxu0 0
    %118 = vmatpush1.bf16.msra.mxu0 0
    %119 = vmatprep.subr.bf16.mxu0 0
    %120 = vmatpush1.bf16.msra.mxu0 0
    %121 = vmatprep.subr.bf16.mxu0 0
    %122 = vmatpush1.bf16.msra.mxu0 %v102
    %123 = vmatprep.subr.bf16.mxu0 0
    %124 = vmatpush1.bf16.msra.mxu0 %v101
    %125 = vmatprep.subr.bf16.mxu0 0
    %126 = vmatpush2.bf16.msra.mxu0 0
    %127 = vmatprep.subr.bf16.mxu0 0
    %128 = vmatpush2.bf16.msra.mxu0 0
    %129 = vmatprep.subr.bf16.mxu0 0
    %130 = vmatpush2.bf16.msra.mxu0 0
    %131 = vmatprep.subr.bf16.mxu0 0
    %132 = vmatpush2.bf16.msra.mxu0 0
    %133 = vmatprep.subr.bf16.mxu0 0
    %134 = vmatpush2.bf16.msra.mxu0 0
    %135 = vmatprep.subr.bf16.mxu0 0
    %136 = vmatpush2.bf16.msra.mxu0 0
    %137 = vmatprep.subr.bf16.mxu0 0
    %138 = vmatpush2.bf16.msra.mxu0 0
    %139 = vmatprep.subr.bf16.mxu0 0
    %140 = vmatpush2.bf16.msra.mxu0 0
    %141 = vmatprep.mubr.bf16.mxu0 0
    %142 = vmatmul.mubr.bf16.gmra.mxu0 %v107
    %v143 = vpop.f32.mrf.mxu0
    %v144 = vadd.f32 %v91, %v143
    %v145 = vpop.f32.mrf.mxu0
    %v146 = vpop.f32.mrf.mxu0
    %v147 = vpop.f32.mrf.mxu0
    %148 = vdwg.mxu0
    %v149 = vmax.f32 %v144, 0.0
    %v150 = vpack.c.bf16 %v149, %v149
    %v151 = vld [vmem:[#allocation6] sm:$0xf]
    %v152 = vld [vmem:[#allocation6 + $0x4] sm:$0xf]
    %v153 = vld [vmem:[#allocation6 + $0x8] sm:$0xf]
    %v154 = vld [vmem:[#allocation6 + $0xc] sm:$0xf]
    %v155 = vld [vmem:[#allocation6 + $0x10] sm:$0xf]
    %v156 = vld [vmem:[#allocation6 + $0x14] sm:$0xf]
    %v157 = vld [vmem:[#allocation6 + $0x18] sm:$0xf]
    %v158 = vld [vmem:[#allocation6 + $0x1c] sm:$0xf]
    %v159 = vld [vmem:[#allocation6 + $0x20] sm:$0xf]
    %v160 = vld [vmem:[#allocation6 + $0x24] sm:$0xf]
    %v161 = vld [vmem:[#allocation6 + $0x28] sm:$0xf]
    %v162 = vld [vmem:[#allocation6 + $0x2c] sm:$0xf]
    %v163 = vld [vmem:[#allocation6 + $0x30] sm:$0xf]
    %v164 = vld [vmem:[#allocation6 + $0x34] sm:$0xf]
    %v165 = vld [vmem:[#allocation6 + $0x38] sm:$0xf]
    %v166 = vld [vmem:[#allocation6 + $0x3c] sm:$0xf]
    %v167 = vld [vmem:[%s4] sm:$0x1]
    %v169 = vlaneseq
    %v170 = vshrl.u32 %v169, 7
    %v171 = vsub.s32 0, %v170
    %v172 = vrot.slane %v167, %v171
    %v190 = vunpack.c.l.b16 %v151
    %v191 = vunpack.c.l.b16 %v152
    %v192 = vunpack.c.l.b16 %v153
    %v193 = vunpack.c.l.b16 %v154
    %v194 = vunpack.c.l.b16 %v155
    %v195 = vunpack.c.l.b16 %v156
    %v196 = vunpack.c.l.b16 %v157
    %v197 = vunpack.c.l.b16 %v158
    %v198 = vunpack.c.l.b16 %v159
    %v199 = vunpack.c.l.b16 %v160
    %v200 = vunpack.c.l.b16 %v161
    %v201 = vunpack.c.l.b16 %v162
    %v202 = vunpack.c.l.b16 %v163
    %v203 = vunpack.c.l.b16 %v164
    %v204 = vunpack.c.l.b16 %v165
    %v205 = vunpack.c.l.b16 %v166
    %v206 = vpack.c.b16 %v191, %v190
    %v207 = vpack.c.b16 %v193, %v192
    %v208 = vpack.c.b16 %v195, %v194
    %v209 = vpack.c.b16 %v197, %v196
    %v210 = vpack.c.b16 %v199, %v198
    %v211 = vpack.c.b16 %v201, %v200
    %v212 = vpack.c.b16 %v203, %v202
    %v213 = vpack.c.b16 %v205, %v204
    %222 = vmatprep.subr.bf16.mxu0 0
    %223 = vmatpush1.bf16.msra.mxu0 %v213
    %224 = vmatprep.subr.bf16.mxu0 0
    %225 = vmatpush1.bf16.msra.mxu0 %v212
    %226 = vmatprep.subr.bf16.mxu0 0
    %227 = vmatpush1.bf16.msra.mxu0 %v211
    %228 = vmatprep.subr.bf16.mxu0 0
    %229 = vmatpush1.bf16.msra.mxu0 %v210
    %230 = vmatprep.subr.bf16.mxu0 0
    %231 = vmatpush1.bf16.msra.mxu0 %v209
    %232 = vmatprep.subr.bf16.mxu0 0
    %233 = vmatpush1.bf16.msra.mxu0 %v208
    %234 = vmatprep.subr.bf16.mxu0 0
    %235 = vmatpush1.bf16.msra.mxu0 %v207
    %236 = vmatprep.subr.bf16.mxu0 0
    %237 = vmatpush1.bf16.msra.mxu0 %v206
    %238 = vmatprep.subr.bf16.mxu0 0
    %239 = vmatpush2.bf16.msra.mxu0 0
    %240 = vmatprep.subr.bf16.mxu0 0
    %241 = vmatpush2.bf16.msra.mxu0 0
    %242 = vmatprep.subr.bf16.mxu0 0
    %243 = vmatpush2.bf16.msra.mxu0 0
    %244 = vmatprep.subr.bf16.mxu0 0
    %245 = vmatpush2.bf16.msra.mxu0 0
    %246 = vmatprep.subr.bf16.mxu0 0
    %247 = vmatpush2.bf16.msra.mxu0 0
    %248 = vmatprep.subr.bf16.mxu0 0
    %249 = vmatpush2.bf16.msra.mxu0 0
    %250 = vmatprep.subr.bf16.mxu0 0
    %251 = vmatpush2.bf16.msra.mxu0 0
    %252 = vmatprep.subr.bf16.mxu0 0
    %253 = vmatpush2.bf16.msra.mxu0 0
    %254 = vmatprep.mubr.bf16.mxu0 0
    %255 = vmatmul.mubr.bf16.gmra.mxu0 %v150
    %v256 = vpop.f32.mrf.mxu0
    %v257 = vadd.f32 %v172, %v256
    %v258 = vpop.f32.mrf.mxu0
    %v259 = vpop.f32.mrf.mxu0
    %v260 = vpop.f32.mrf.mxu0
    %261 = vdwg.mxu0
    %v262 = vmax.f32 %v257, 0.0
    %v263 = vpack.c.bf16 %v262, %v262
    %v264 = vld [vmem:[#allocation7] sm:$0xf]
    %v265 = vld [vmem:[#allocation7 + $0x4] sm:$0xf]
    %v266 = vld [vmem:[#allocation7 + $0x8] sm:$0xf]
    %v267 = vld [vmem:[#allocation7 + $0xc] sm:$0xf]
    %v268 = vld [vmem:[#allocation7 + $0x10] sm:$0xf]
    %v269 = vld [vmem:[#allocation7 + $0x14] sm:$0xf]
    %v270 = vld [vmem:[#allocation7 + $0x18] sm:$0xf]
    %v271 = vld [vmem:[#allocation7 + $0x1c] sm:$0xf]
    %v272 = vld [vmem:[#allocation7 + $0x20] sm:$0xf]
    %v273 = vld [vmem:[#allocation7 + $0x24] sm:$0xf]
    %v274 = vld [vmem:[#allocation7 + $0x28] sm:$0xf]
    %v275 = vld [vmem:[#allocation7 + $0x2c] sm:$0xf]
    %v276 = vld [vmem:[#allocation7 + $0x30] sm:$0xf]
    %v277 = vld [vmem:[#allocation7 + $0x34] sm:$0xf]
    %v278 = vld [vmem:[#allocation7 + $0x38] sm:$0xf]
    %v279 = vld [vmem:[#allocation7 + $0x3c] sm:$0xf]
    %v280 = vld [vmem:[%s6] sm:$0x1]
    %v282 = vlaneseq
    %v283 = vshrl.u32 %v282, 7
    %v284 = vsub.s32 0, %v283
    %v285 = vrot.slane %v280, %v284
    %v303 = vunpack.c.l.b16 %v264
    %v304 = vunpack.c.l.b16 %v265
    %v305 = vunpack.c.l.b16 %v266
    %v306 = vunpack.c.l.b16 %v267
    %v307 = vunpack.c.l.b16 %v268
    %v308 = vunpack.c.l.b16 %v269
    %v309 = vunpack.c.l.b16 %v270
    %v310 = vunpack.c.l.b16 %v271
    %v311 = vunpack.c.l.b16 %v272
    %v312 = vunpack.c.l.b16 %v273
    %v313 = vunpack.c.l.b16 %v274
    %v314 = vunpack.c.l.b16 %v275
    %v315 = vunpack.c.l.b16 %v276
    %v316 = vunpack.c.l.b16 %v277
    %v317 = vunpack.c.l.b16 %v278
    %v318 = vunpack.c.l.b16 %v279
    %v319 = vpack.c.b16 %v304, %v303
    %v320 = vpack.c.b16 %v306, %v305
    %v321 = vpack.c.b16 %v308, %v307
    %v322 = vpack.c.b16 %v310, %v309
    %v323 = vpack.c.b16 %v312, %v311
    %v324 = vpack.c.b16 %v314, %v313
    %v325 = vpack.c.b16 %v316, %v315
    %v326 = vpack.c.b16 %v318, %v317
    %335 = vmatprep.subr.bf16.mxu0 0
    %336 = vmatpush1.bf16.msra.mxu0 %v326
    %337 = vmatprep.subr.bf16.mxu0 0
    %338 = vmatpush1.bf16.msra.mxu0 %v325
    %339 = vmatprep.subr.bf16.mxu0 0
    %340 = vmatpush1.bf16.msra.mxu0 %v324
    %341 = vmatprep.subr.bf16.mxu0 0
    %342 = vmatpush1.bf16.msra.mxu0 %v323
    %343 = vmatprep.subr.bf16.mxu0 0
    %344 = vmatpush1.bf16.msra.mxu0 %v322
    %345 = vmatprep.subr.bf16.mxu0 0
    %346 = vmatpush1.bf16.msra.mxu0 %v321
    %347 = vmatprep.subr.bf16.mxu0 0
    %348 = vmatpush1.bf16.msra.mxu0 %v320
    %349 = vmatprep.subr.bf16.mxu0 0
    %350 = vmatpush1.bf16.msra.mxu0 %v319
    %351 = vmatprep.subr.bf16.mxu0 0
    %352 = vmatpush2.bf16.msra.mxu0 0
    %353 = vmatprep.subr.bf16.mxu0 0
    %354 = vmatpush2.bf16.msra.mxu0 0
    %355 = vmatprep.subr.bf16.mxu0 0
    %356 = vmatpush2.bf16.msra.mxu0 0
    %357 = vmatprep.subr.bf16.mxu0 0
    %358 = vmatpush2.bf16.msra.mxu0 0
    %359 = vmatprep.subr.bf16.mxu0 0
    %360 = vmatpush2.bf16.msra.mxu0 0
    %361 = vmatprep.subr.bf16.mxu0 0
    %362 = vmatpush2.bf16.msra.mxu0 0
    %363 = vmatprep.subr.bf16.mxu0 0
    %364 = vmatpush2.bf16.msra.mxu0 0
    %365 = vmatprep.subr.bf16.mxu0 0
    %366 = vmatpush2.bf16.msra.mxu0 0
    %367 = vmatprep.mubr.bf16.mxu0 0
    %368 = vmatmul.mubr.bf16.gmra.mxu0 %v263
    %v369 = vpop.f32.mrf.mxu0
    %v370 = vadd.f32 %v285, %v369
    %v371 = vpop.f32.mrf.mxu0
    %v372 = vpop.f32.mrf.mxu0
    %v373 = vpop.f32.mrf.mxu0
    %374 = vdwg.mxu0
    %375 = vmax.xlane.f32.xlu0 %v370
    %v376 = vpop.xlane.xlu0 %375
    %v377 = vsub.f32 %v370, %v376
    %v378 = vmul.f32 %v377, 1.442695
    %v379 = vpow.pop %v378
    %380 = vadd.xlane.f32.xlu0 %v379
    %v381 = vpop.xlane.xlu0 %380
    %v382 = vlog2.pop %v381
    %v383 = vmul.f32 %v382, 0.6931472
    %v384 = vsub.f32 %v377, %v383
    %385 = vxpose.xlu0.b32.start [1/16] %v384, 128
    %386 = vxpose.xlu0.b32.cont [2/16] 0.0, 128
    %387 = vxpose.xlu0.b32.cont [3/16] 0.0, 128
    %388 = vxpose.xlu0.b32.cont [4/16] 0.0, 128
    %389 = vxpose.xlu0.b32.cont [5/16] 0.0, 128
    %390 = vxpose.xlu0.b32.cont [6/16] 0.0, 128
    %391 = vxpose.xlu0.b32.cont [7/16] 0.0, 128
    %392 = vxpose.xlu0.b32.cont [8/16] 0.0, 128
    %393 = vxpose.xlu0.b32.cont [9/16] 0.0, 128
    %394 = vxpose.xlu0.b32.cont [10/16] 0.0, 128
    %395 = vxpose.xlu0.b32.cont [11/16] 0.0, 128
    %396 = vxpose.xlu0.b32.cont [12/16] 0.0, 128
    %397 = vxpose.xlu0.b32.cont [13/16] 0.0, 128
    %398 = vxpose.xlu0.b32.cont [14/16] 0.0, 128
    %399 = vxpose.xlu0.b32.cont [15/16] 0.0, 128
    %400 = vxpose.xlu0.b32.end [16/16] 0.0, 128
    %v401 = vpop.trf.xlu0
    %v402 = vpop.trf.xlu0
    %v403 = vpop.trf.xlu0
    %v404 = vpop.trf.xlu0
    %v405 = vpop.trf.xlu0
    %v406 = vpop.trf.xlu0
    %v407 = vpop.trf.xlu0
    %v408 = vpop.trf.xlu0
    %v409 = vpop.trf.xlu0
    %v410 = vpop.trf.xlu0
    %v411 = vpop.trf.xlu0
    %v412 = vpop.trf.xlu0
    %v413 = vpop.trf.xlu0
    %v414 = vpop.trf.xlu0
    %v415 = vpop.trf.xlu0
    %v416 = vpop.trf.xlu0
    %vm417 = vcmask 64512
    %418 = vst.msk [vmem:[%s7] sm:$0xff] %vm417, %v401
    // Predicated region
    $region46: #{ffnn_forward.1} parent=1 // pred_check
      _
    $region47: #{ffnn_forward.1} parent=1 // pred_check_branch
      %420 = sbr.rel (0) target = $region49
    $region48: #{ffnn_forward.1} parent=1 // pred_region
      _
    $region49: #{ffnn_forward.1} parent=1 // pred_fallthru
      _
    // Predicated region
    $region50: #{ffnn_forward.1} parent=1 // pred_check
      _
    $region51: #{ffnn_forward.1} parent=1 // pred_check_branch
      %422 = sbr.rel (0) target = $region53
    $region52: #{ffnn_forward.1} parent=1 // pred_region
      _
    $region53: #{ffnn_forward.1} parent=1 // pred_fallthru
      _
    %423 = vsyncpa [#allocation3], 1
    %424 = vsyncpa [#allocation5], 1
    %425 = vsyncpa [#allocation8], 1

</llo_original>
